<compile_context>
chip_gen: v7x
topology: tpu7x:2x2x1
jax: 0.10.0
libtpu: 0.0.40
codegen_flags: <defaults>
</compile_context>

<pallas_src>
import functools
import math

import jax
import jax.numpy as jnp
from jax import lax
from jax.experimental import pallas as pl
from jax.experimental.pallas import tpu as pltpu  # noqa: F401  (kept for scaled variants)


def _round_up(n, m):
    return ((n + m - 1) // m) * m


def _decoder_kernel(x_ref, h0_ref, wih_ref, whh_ref, b_ref, wfc_ref, bfc_ref,
                    out_ref, hn_ref, *, batch_pad, seq):
    """Single invocation; everything resident in VMEM.

    x_ref:   (S*B_pad, H_pad) time-major-flattened inputs, rows [t*B_pad:(t+1)*B_pad] = x_t.
    out_ref: (S*B_pad, O_pad) lane-dense output slab, same row layout.
    hn_ref:  (B_pad, H_pad) final hidden.
    """
    # --- Batched input projection for ALL timesteps (one MXU op, bias folded in once). ---
    proj = (jnp.dot(x_ref[...], wih_ref[...], preferred_element_type=jnp.float32)
            + b_ref[...])                                   # (S*B_pad, H_pad)

    whh = whh_ref[...]                                      # (H_pad, H_pad), loaded once
    h = h0_ref[...]                                         # (B_pad, H_pad) == 1 vreg

    # --- Serial recurrence: only h @ W_hh^T + precomputed projection + tanh per step. ---
    # Fully unrolled (tiny fixed S); each h_t is one (8,128) vreg, so the whole history
    # stays in registers instead of a VMEM scratch.
    # TODO(synk): for large S, switch to lax.fori_loop(..., unroll=True) + a VMEM history
    #             scratch and pl.ds slices instead of full Python unroll.
    hs = []
    for t in range(seq):
        lo = t * batch_pad                                  # static, 8-row aligned
        h = jnp.tanh(proj[lo:lo + batch_pad, :]
                     + jnp.dot(h, whh, preferred_element_type=jnp.float32))
        hs.append(h)

    # Final hidden state: one unmasked (8,128) store.
    hn_ref[...] = h.astype(hn_ref.dtype)

    # --- Batched FC head straight out of vregs: one matmul + ONE bulk lane-dense store. ---
    hs_all = jnp.concatenate(hs, axis=0)                    # (S*B_pad, H_pad)
    out_ref[...] = (jnp.dot(hs_all, wfc_ref[...], preferred_element_type=jnp.float32)
                    + bfc_ref[...]).astype(out_ref.dtype)


def decoder_rnn_forward(x, hidden, kparams):
    """x: (B, S, H) f32, hidden: (1, B, H) f32 -> (out (B, S, O), hidden (1, B, H))."""
    B, S, H = x.shape
    O = kparams["output_size"]
    H_pad = kparams["w_ih_t"].shape[0]
    O_pad = kparams["w_fc_t"].shape[1]
    B_pad = _round_up(B, 8)                                 # 8-sublane boundary

    # Time-major + zero-pad batch/hidden so rows [t*B_pad:(t+1)*B_pad] are timestep t and
    # every tile is (8,128)-aligned.  Zero padding is semantics-preserving: the recurrence
    # is row-independent (padded batch rows never mix into real rows) and padded hidden /
    # output lanes stay exactly zero because the padded weight rows/cols are zero.
    x_tm = jnp.transpose(x, (1, 0, 2))                              # (S, B, H)
    x_tm = jnp.pad(x_tm, ((0, 0), (0, B_pad - B), (0, H_pad - H)))
    x_flat = x_tm.reshape(S * B_pad, H_pad)
    h0 = jnp.pad(hidden[0], ((0, B_pad - B), (0, H_pad - H)))       # (B_pad, H_pad)

    kernel = functools.partial(_decoder_kernel, batch_pad=B_pad, seq=S)

    out_flat, h_n = pl.pallas_call(
        kernel,
        out_shape=(
            jax.ShapeDtypeStruct((S * B_pad, O_pad), jnp.float32),  # all timestep outputs
            jax.ShapeDtypeStruct((B_pad, H_pad), jnp.float32),      # final hidden
        ),
        # No grid: the whole (tiny, padded) problem lives in VMEM for one invocation.
        # TODO(synk): at realistic sizes add a batch grid with BlockSpecs,
        #             dimension_semantics=("parallel",) (v7x 2 TCs) and vmem_limit_bytes.
    )(
        x_flat, h0,
        kparams["w_ih_t"], kparams["w_hh_t"], kparams["b_rnn"],
        kparams["w_fc_t"], kparams["b_fc"],
    )

    out = jnp.transpose(out_flat.reshape(S, B_pad, O_pad)[:, :B, :O], (1, 0, 2))
    return out, h_n[None, :B, :H]                                   # hidden: (1, B, H)


def init_params(key, hidden_size, output_size):
    """PyTorch-style uniform(-1/sqrt(fan_in), 1/sqrt(fan_in)) init, raw (unpadded) layout."""
    ks = jax.random.split(key, 6)
    k = 1.0 / math.sqrt(hidden_size)
    return {
        "w_ih": jax.random.uniform(ks[0], (hidden_size, hidden_size), jnp.float32, -k, k),
        "w_hh": jax.random.uniform(ks[1], (hidden_size, hidden_size), jnp.float32, -k, k),
        "b_ih": jax.random.uniform(ks[2], (hidden_size,), jnp.float32, -k, k),
        "b_hh": jax.random.uniform(ks[3], (hidden_size,), jnp.float32, -k, k),
        "w_fc": jax.random.uniform(ks[4], (output_size, hidden_size), jnp.float32, -k, k),
        "b_fc": jax.random.uniform(ks[5], (output_size,), jnp.float32, -k, k),
    }


def prepare_kernel_params(params):
    """One-time: transpose + zero-pad weights to (8,128)-friendly shapes for the kernel."""
    H = params["w_ih"].shape[0]
    O = params["w_fc"].shape[0]
    H_pad = _round_up(H, 128)
    O_pad = _round_up(O, 128)

    def pad2(a, rows, cols):
        return jnp.pad(a, ((0, rows - a.shape[0]), (0, cols - a.shape[1])))

    return {
        "w_ih_t": pad2(params["w_ih"].T, H_pad, H_pad),             # so kernel does x @ W_ih^T
        "w_hh_t": pad2(params["w_hh"].T, H_pad, H_pad),             # h @ W_hh^T
        "b_rnn": pad2((params["b_ih"] + params["b_hh"]).reshape(1, H), 1, H_pad),
        "w_fc_t": pad2(params["w_fc"].T, H_pad, O_pad),             # h @ W_fc^T
        "b_fc": pad2(params["b_fc"].reshape(1, O), 1, O_pad),
        "hidden_size": H,
        "output_size": O,
    }


def _reference_forward(x, hidden, params):
    """Pure-JAX reference (lax.scan) matching PyTorch nn.RNN(tanh) + Linear semantics."""
    h0 = hidden[0]

    def step(h, x_t):
        h_new = jnp.tanh(x_t @ params["w_ih"].T + params["b_ih"]
                         + h @ params["w_hh"].T + params["b_hh"])
        return h_new, h_new

    h_n, hs = lax.scan(step, h0, jnp.transpose(x, (1, 0, 2)))
    out = jnp.transpose(hs, (1, 0, 2)) @ params["w_fc"].T + params["b_fc"]
    return out, h_n[None]


if __name__ == "__main__":
    hidden_size = 10
    output_size = 5
    batch = 2
    seq = 8

    key = jax.random.PRNGKey(0)
    k_p, k_x, k_h = jax.random.split(key, 3)

    params = init_params(k_p, hidden_size, output_size)
    kparams = prepare_kernel_params(params)
    x = jax.random.normal(k_x, (batch, seq, hidden_size), jnp.float32)
    hidden = jax.random.normal(k_h, (1, batch, hidden_size), jnp.float32)

    out, h_n = decoder_rnn_forward(x, hidden, kparams)
    out = jax.block_until_ready(out)
    h_n = jax.block_until_ready(h_n)

    out_ref, h_ref = _reference_forward(x, hidden, params)
    assert out.shape == (batch, seq, output_size)
    assert h_n.shape == (1, batch, hidden_size)
    assert jnp.allclose(out, out_ref, atol=1e-5, rtol=1e-5)
    assert jnp.allclose(h_n, h_ref, atol=1e-5, rtol=1e-5)

    print("KERNEL_OK")
</pallas_src>

<mosaic_0001>
module attributes {stable_mosaic.version = 11 : i64} {
  func.func @_decoder_kernel(%arg0: memref<64x128xf32, #tpu.memory_space<vmem>>, %arg1: memref<8x128xf32, #tpu.memory_space<vmem>>, %arg2: memref<128x128xf32, #tpu.memory_space<vmem>>, %arg3: memref<128x128xf32, #tpu.memory_space<vmem>>, %arg4: memref<1x128xf32, #tpu.memory_space<vmem>>, %arg5: memref<128x128xf32, #tpu.memory_space<vmem>>, %arg6: memref<1x128xf32, #tpu.memory_space<vmem>>, %arg7: memref<64x128xf32, #tpu.memory_space<vmem>>, %arg8: memref<8x128xf32, #tpu.memory_space<vmem>>) attributes {dimension_semantics = [], scalar_prefetch = 0 : i64, scratch_operands = 0 : i64, tpu.core_type = #tpu.core_type<tc>} {
    %c0 = arith.constant 0 : index
    %c0_0 = arith.constant 0 : index
    %0 = vector.load %arg0[%c0, %c0_0] : memref<64x128xf32, #tpu.memory_space<vmem>>, vector<64x128xf32>
    %c0_1 = arith.constant 0 : index
    %c0_2 = arith.constant 0 : index
    %1 = vector.load %arg2[%c0_1, %c0_2] : memref<128x128xf32, #tpu.memory_space<vmem>>, vector<128x128xf32>
    %cst = arith.constant dense<0.000000e+00> : vector<64x128xf32>
    %2 = tpu.matmul %0, %1, %cst {dimension_numbers = #tpu.dot_dimension_numbers<[1], [0], [0], [1], [0, 0, 1, 1], [], []>} : vector<64x128xf32>, vector<128x128xf32>, vector<64x128xf32> -> vector<64x128xf32>
    %c0_3 = arith.constant 0 : index
    %c0_4 = arith.constant 0 : index
    %3 = vector.load %arg4[%c0_3, %c0_4] : memref<1x128xf32, #tpu.memory_space<vmem>>, vector<1x128xf32>
    %4 = vector.broadcast %3 : vector<1x128xf32> to vector<64x128xf32>
    %5 = arith.addf %2, %4 : vector<64x128xf32>
    %c0_5 = arith.constant 0 : index
    %c0_6 = arith.constant 0 : index
    %6 = vector.load %arg3[%c0_5, %c0_6] : memref<128x128xf32, #tpu.memory_space<vmem>>, vector<128x128xf32>
    %c0_7 = arith.constant 0 : index
    %c0_8 = arith.constant 0 : index
    %7 = vector.load %arg1[%c0_7, %c0_8] : memref<8x128xf32, #tpu.memory_space<vmem>>, vector<8x128xf32>
    %8 = vector.extract_strided_slice %5 {offsets = [0, 0], sizes = [8, 128], strides = [1, 1]} : vector<64x128xf32> to vector<8x128xf32>
    %cst_9 = arith.constant dense<0.000000e+00> : vector<8x128xf32>
    %9 = tpu.matmul %7, %6, %cst_9 {dimension_numbers = #tpu.dot_dimension_numbers<[1], [0], [0], [1], [0, 0, 1, 1], [], []>} : vector<8x128xf32>, vector<128x128xf32>, vector<8x128xf32> -> vector<8x128xf32>
    %10 = arith.addf %8, %9 : vector<8x128xf32>
    %11 = math.tanh %10 : vector<8x128xf32>
    %12 = vector.extract_strided_slice %5 {offsets = [8, 0], sizes = [8, 128], strides = [1, 1]} : vector<64x128xf32> to vector<8x128xf32>
    %cst_10 = arith.constant dense<0.000000e+00> : vector<8x128xf32>
    %13 = tpu.matmul %11, %6, %cst_10 {dimension_numbers = #tpu.dot_dimension_numbers<[1], [0], [0], [1], [0, 0, 1, 1], [], []>} : vector<8x128xf32>, vector<128x128xf32>, vector<8x128xf32> -> vector<8x128xf32>
    %14 = arith.addf %12, %13 : vector<8x128xf32>
    %15 = math.tanh %14 : vector<8x128xf32>
    %16 = vector.extract_strided_slice %5 {offsets = [16, 0], sizes = [8, 128], strides = [1, 1]} : vector<64x128xf32> to vector<8x128xf32>
    %cst_11 = arith.constant dense<0.000000e+00> : vector<8x128xf32>
    %17 = tpu.matmul %15, %6, %cst_11 {dimension_numbers = #tpu.dot_dimension_numbers<[1], [0], [0], [1], [0, 0, 1, 1], [], []>} : vector<8x128xf32>, vector<128x128xf32>, vector<8x128xf32> -> vector<8x128xf32>
    %18 = arith.addf %16, %17 : vector<8x128xf32>
    %19 = math.tanh %18 : vector<8x128xf32>
    %20 = vector.extract_strided_slice %5 {offsets = [24, 0], sizes = [8, 128], strides = [1, 1]} : vector<64x128xf32> to vector<8x128xf32>
    %cst_12 = arith.constant dense<0.000000e+00> : vector<8x128xf32>
    %21 = tpu.matmul %19, %6, %cst_12 {dimension_numbers = #tpu.dot_dimension_numbers<[1], [0], [0], [1], [0, 0, 1, 1], [], []>} : vector<8x128xf32>, vector<128x128xf32>, vector<8x128xf32> -> vector<8x128xf32>
    %22 = arith.addf %20, %21 : vector<8x128xf32>
    %23 = math.tanh %22 : vector<8x128xf32>
    %24 = vector.extract_strided_slice %5 {offsets = [32, 0], sizes = [8, 128], strides = [1, 1]} : vector<64x128xf32> to vector<8x128xf32>
    %cst_13 = arith.constant dense<0.000000e+00> : vector<8x128xf32>
    %25 = tpu.matmul %23, %6, %cst_13 {dimension_numbers = #tpu.dot_dimension_numbers<[1], [0], [0], [1], [0, 0, 1, 1], [], []>} : vector<8x128xf32>, vector<128x128xf32>, vector<8x128xf32> -> vector<8x128xf32>
    %26 = arith.addf %24, %25 : vector<8x128xf32>
    %27 = math.tanh %26 : vector<8x128xf32>
    %28 = vector.extract_strided_slice %5 {offsets = [40, 0], sizes = [8, 128], strides = [1, 1]} : vector<64x128xf32> to vector<8x128xf32>
    %cst_14 = arith.constant dense<0.000000e+00> : vector<8x128xf32>
    %29 = tpu.matmul %27, %6, %cst_14 {dimension_numbers = #tpu.dot_dimension_numbers<[1], [0], [0], [1], [0, 0, 1, 1], [], []>} : vector<8x128xf32>, vector<128x128xf32>, vector<8x128xf32> -> vector<8x128xf32>
    %30 = arith.addf %28, %29 : vector<8x128xf32>
    %31 = math.tanh %30 : vector<8x128xf32>
    %32 = vector.extract_strided_slice %5 {offsets = [48, 0], sizes = [8, 128], strides = [1, 1]} : vector<64x128xf32> to vector<8x128xf32>
    %cst_15 = arith.constant dense<0.000000e+00> : vector<8x128xf32>
    %33 = tpu.matmul %31, %6, %cst_15 {dimension_numbers = #tpu.dot_dimension_numbers<[1], [0], [0], [1], [0, 0, 1, 1], [], []>} : vector<8x128xf32>, vector<128x128xf32>, vector<8x128xf32> -> vector<8x128xf32>
    %34 = arith.addf %32, %33 : vector<8x128xf32>
    %35 = math.tanh %34 : vector<8x128xf32>
    %36 = vector.extract_strided_slice %5 {offsets = [56, 0], sizes = [8, 128], strides = [1, 1]} : vector<64x128xf32> to vector<8x128xf32>
    %cst_16 = arith.constant dense<0.000000e+00> : vector<8x128xf32>
    %37 = tpu.matmul %35, %6, %cst_16 {dimension_numbers = #tpu.dot_dimension_numbers<[1], [0], [0], [1], [0, 0, 1, 1], [], []>} : vector<8x128xf32>, vector<128x128xf32>, vector<8x128xf32> -> vector<8x128xf32>
    %38 = arith.addf %36, %37 : vector<8x128xf32>
    %39 = math.tanh %38 : vector<8x128xf32>
    %c0_17 = arith.constant 0 : index
    %c0_18 = arith.constant 0 : index
    %40 = vector.load %arg8[%c0_17, %c0_18] : memref<8x128xf32, #tpu.memory_space<vmem>>, vector<8x128xf32>
    tpu.vector_store %arg8[%c0_17, %c0_18], %39 {strides = array<i32>} : memref<8x128xf32, #tpu.memory_space<vmem>>, vector<8x128xf32>,
    %41 = tpu.concatenate %11, %15, %19, %23, %27, %31, %35, %39 in 0 : vector<8x128xf32>, vector<8x128xf32>, vector<8x128xf32>, vector<8x128xf32>, vector<8x128xf32>, vector<8x128xf32>, vector<8x128xf32>, vector<8x128xf32> -> vector<64x128xf32>
    %c0_19 = arith.constant 0 : index
    %c0_20 = arith.constant 0 : index
    %42 = vector.load %arg5[%c0_19, %c0_20] : memref<128x128xf32, #tpu.memory_space<vmem>>, vector<128x128xf32>
    %cst_21 = arith.constant dense<0.000000e+00> : vector<64x128xf32>
    %43 = tpu.matmul %41, %42, %cst_21 {dimension_numbers = #tpu.dot_dimension_numbers<[1], [0], [0], [1], [0, 0, 1, 1], [], []>} : vector<64x128xf32>, vector<128x128xf32>, vector<64x128xf32> -> vector<64x128xf32>
    %c0_22 = arith.constant 0 : index
    %c0_23 = arith.constant 0 : index
    %44 = vector.load %arg6[%c0_22, %c0_23] : memref<1x128xf32, #tpu.memory_space<vmem>>, vector<1x128xf32>
    %45 = vector.broadcast %44 : vector<1x128xf32> to vector<64x128xf32>
    %46 = arith.addf %43, %45 : vector<64x128xf32>
    %c0_24 = arith.constant 0 : index
    %c0_25 = arith.constant 0 : index
    %47 = vector.load %arg7[%c0_24, %c0_25] : memref<64x128xf32, #tpu.memory_space<vmem>>, vector<64x128xf32>
    tpu.vector_store %arg7[%c0_24, %c0_25], %46 {strides = array<i32>} : memref<64x128xf32, #tpu.memory_space<vmem>>, vector<64x128xf32>,
    return
  }
}

</mosaic_0001>

<llo_original>
// kernel: tpu_custom_call.1
$region0: #{tpu_custom_call.1}
  #allocation0 [shape = 'u32[]', space=smem, size = 0x4, offset = 0x4, fixed_abs, tag = 'smem constant byte address 0x4 - core index']
  #allocation1 [shape = 'u32[144,128]{1,0:T(1,128)}', space=vmem, size = 0x12000, scoped, tag = 'internal scratch']
  %s0 = inlined_call_operand.hbm [shape: f32[64,128], index: 0, kind: input, shape index: {}]
  %s1 = inlined_call_operand.hbm [shape: f32[8,128], index: 1, kind: input, shape index: {}]
  %s2 = inlined_call_operand.hbm [shape: f32[128,128], index: 2, kind: input, shape index: {}]
  %s3 = inlined_call_operand.hbm [shape: f32[128,128], index: 3, kind: input, shape index: {}]
  %s4 = inlined_call_operand.vmem [shape: f32[1,128], index: 4, kind: input, shape index: {}]
  %s5 = inlined_call_operand.hbm [shape: f32[128,128], index: 5, kind: input, shape index: {}]
  %s6 = inlined_call_operand.vmem [shape: f32[1,128], index: 6, kind: input, shape index: {}]
  %s7 = inlined_call_operand.hbm [shape: f32[64,128], index: 7, kind: output, shape index: {0}]
  %s8 = inlined_call_operand.hbm [shape: f32[8,128], index: 8, kind: output, shape index: {1}]
  %9 = xla_tuple %s7, %s8
  %s10 = sld [smem:[#allocation0]]
  $region66: #{tpu_custom_call.1} parent=0
    _
  %s12 = ssub.s32 1, %s10
  %s13 = scalar_select 0, %s12, %s10
  $region1: #{tpu_custom_call.1} parent=0
    #allocation2 [shape = 'u8[32768]{0}', space=vmem, size = 0x8000, scoped, tag = 'input window, operand 0, single buffered']
    #allocation3 [shape = 's32[1]{0}', space=sflag, size = 0x4, scoped, tag = 'scoped memory for tpu_custom_call.1']
    #allocation4 [shape = 's32[1]{0}', space=sflag, size = 0x4, scoped, tag = 'scoped memory for tpu_custom_call.1']
    #allocation5 [shape = 'u8[4096]{0}', space=vmem, size = 0x1000, scoped, tag = 'input window, operand 1, single buffered']
    #allocation6 [shape = 's32[1]{0}', space=sflag, size = 0x4, scoped, tag = 'scoped memory for tpu_custom_call.1']
    #allocation7 [shape = 'u8[65536]{0}', space=vmem, size = 0x10000, scoped, tag = 'input window, operand 2, single buffered']
    #allocation8 [shape = 'u8[65536]{0}', space=vmem, size = 0x10000, scoped, tag = 'input window, operand 3, single buffered']
    #allocation9 [shape = 's32[1]{0}', space=sflag, size = 0x4, scoped, tag = 'scoped memory for tpu_custom_call.1']
    #allocation10 [shape = 'u8[65536]{0}', space=vmem, size = 0x10000, scoped, tag = 'input window, operand 5, single buffered']
    #allocation11 [shape = 'u8[32768]{0}', space=vmem, size = 0x8000, scoped, tag = 'output window, operand 0, single buffered']
    #allocation12 [shape = 'u8[4096]{0}', space=vmem, size = 0x1000, scoped, tag = 'output window, operand 1, single buffered']
    #allocation13 [shape = 's32[1]{0}', space=sflag, size = 0x4, scoped, tag = 'scoped memory for tpu_custom_call.1']
    %14 = vsyncpa [#allocation3], 0
    %15 = vsyncpa [#allocation6], 0
    %16 = vsyncpa [#allocation9], 0
    %17 = vsyncpa [#allocation4], 0
    %18 = vsyncpa [#allocation13], 0
    // Predicated region
    $region2: #{tpu_custom_call.1} parent=1 // pred_check
      _
    $region3: #{tpu_custom_call.1} parent=1 // pred_check_branch
      %20 = sbr.rel (0) target = $region5
    $region4: #{tpu_custom_call.1} parent=1 // pred_region
      %s22 = ssub.s32 1024, 1024
      %23 = vsyncadd [#allocation3], %s22
      %s24 = sshll.u32 [#allocation2], 4
      %s25 = int_to_ptr.vmem [resolvable:$true] %s24
      %30 = dma.hbm_to_vmem [thread:$0]  %s0, 1024, %s25, [#allocation3], 128, 128, 8
    $region5: #{tpu_custom_call.1} parent=1 // pred_fallthru
      _
    // Predicated region
    $region6: #{tpu_custom_call.1} parent=1 // pred_check
      _
    $region7: #{tpu_custom_call.1} parent=1 // pred_check_branch
      %32 = sbr.rel (0) target = $region9
    $region8: #{tpu_custom_call.1} parent=1 // pred_region
      %s34 = ssub.s32 128, 128
      %35 = vsyncadd [#allocation6], %s34
      %s37 = sshll.u32 [#allocation5], 4
      %s38 = int_to_ptr.vmem [resolvable:$true] %s37
      %40 = dma.hbm_to_vmem [thread:$0]  %s1, 128, %s38, [#allocation6]
    $region9: #{tpu_custom_call.1} parent=1 // pred_fallthru
      _
    // Predicated region
    $region10: #{tpu_custom_call.1} parent=1 // pred_check
      _
    $region11: #{tpu_custom_call.1} parent=1 // pred_check_branch
      %42 = sbr.rel (0) target = $region13
    $region12: #{tpu_custom_call.1} parent=1 // pred_region
      %s44 = ssub.s32 2048, 2048
      %45 = vsyncadd [#allocation6], %s44
      %s46 = sshll.u32 [#allocation7], 4
      %s47 = int_to_ptr.vmem [resolvable:$true] %s46
      %52 = dma.hbm_to_vmem [thread:$0]  %s2, 2048, %s47, [#allocation6], 128, 128, 8
    $region13: #{tpu_custom_call.1} parent=1 // pred_fallthru
      _
    // Predicated region
    $region14: #{tpu_custom_call.1} parent=1 // pred_check
      _
    $region15: #{tpu_custom_call.1} parent=1 // pred_check_branch
      %54 = sbr.rel (0) target = $region17
    $region16: #{tpu_custom_call.1} parent=1 // pred_region
      %s56 = ssub.s32 2048, 2048
      %57 = vsyncadd [#allocation9], %s56
      %s58 = sshll.u32 [#allocation8], 4
      %s59 = int_to_ptr.vmem [resolvable:$true] %s58
      %64 = dma.hbm_to_vmem [thread:$0]  %s3, 2048, %s59, [#allocation9], 128, 128, 8
    $region17: #{tpu_custom_call.1} parent=1 // pred_fallthru
      _
    // Predicated region
    $region18: #{tpu_custom_call.1} parent=1 // pred_check
      _
    $region19: #{tpu_custom_call.1} parent=1 // pred_check_branch
      %66 = sbr.rel (0) target = $region21
    $region20: #{tpu_custom_call.1} parent=1 // pred_region
      _
    $region21: #{tpu_custom_call.1} parent=1 // pred_fallthru
      _
    // Predicated region
    $region22: #{tpu_custom_call.1} parent=1 // pred_check
      _
    $region23: #{tpu_custom_call.1} parent=1 // pred_check_branch
      %68 = sbr.rel (0) target = $region25
    $region24: #{tpu_custom_call.1} parent=1 // pred_region
      %s70 = ssub.s32 2048, 2048
      %71 = vsyncadd [#allocation9], %s70
      %s72 = sshll.u32 [#allocation10], 4
      %s73 = int_to_ptr.vmem [resolvable:$true] %s72
      %78 = dma.hbm_to_vmem [thread:$0]  %s5, 2048, %s73, [#allocation9], 128, 128, 8
    $region25: #{tpu_custom_call.1} parent=1 // pred_fallthru
      _
    // Predicated region
    $region26: #{tpu_custom_call.1} parent=1 // pred_check
      _
    $region27: #{tpu_custom_call.1} parent=1 // pred_check_branch
      %80 = sbr.rel (0) target = $region29
    $region28: #{tpu_custom_call.1} parent=1 // pred_region
      _
    $region29: #{tpu_custom_call.1} parent=1 // pred_fallthru
      _
    // Predicated region
    $region30: #{tpu_custom_call.1} parent=1 // pred_check
      _
    $region31: #{tpu_custom_call.1} parent=1 // pred_check_branch
      %82 = sbr.rel (0) target = $region33
    $region32: #{tpu_custom_call.1} parent=1 // pred_region
      %83 = dma.done [#allocation3], 1024
    $region33: #{tpu_custom_call.1} parent=1 // pred_fallthru
      _
    // Predicated region
    $region34: #{tpu_custom_call.1} parent=1 // pred_check
      _
    $region35: #{tpu_custom_call.1} parent=1 // pred_check_branch
      %85 = sbr.rel (0) target = $region37
    $region36: #{tpu_custom_call.1} parent=1 // pred_region
      %86 = dma.done [#allocation6], 128
    $region37: #{tpu_custom_call.1} parent=1 // pred_fallthru
      _
    // Predicated region
    $region38: #{tpu_custom_call.1} parent=1 // pred_check
      _
    $region39: #{tpu_custom_call.1} parent=1 // pred_check_branch
      %88 = sbr.rel (0) target = $region41
    $region40: #{tpu_custom_call.1} parent=1 // pred_region
      %89 = dma.done [#allocation6], 2048
    $region41: #{tpu_custom_call.1} parent=1 // pred_fallthru
      _
    // Predicated region
    $region42: #{tpu_custom_call.1} parent=1 // pred_check
      _
    $region43: #{tpu_custom_call.1} parent=1 // pred_check_branch
      %91 = sbr.rel (0) target = $region45
    $region44: #{tpu_custom_call.1} parent=1 // pred_region
      %92 = dma.done [#allocation9], 2048
    $region45: #{tpu_custom_call.1} parent=1 // pred_fallthru
      _
    // Predicated region
    $region46: #{tpu_custom_call.1} parent=1 // pred_check
      _
    $region47: #{tpu_custom_call.1} parent=1 // pred_check_branch
      %94 = sbr.rel (0) target = $region49
    $region48: #{tpu_custom_call.1} parent=1 // pred_region
      %95 = dma.done [#allocation9], 2048
    $region49: #{tpu_custom_call.1} parent=1 // pred_fallthru
      _
    %v96 = vld [vmem:[#allocation2] sm:$0xff]
    %v97 = vld [vmem:[#allocation2 + $0x8] sm:$0xff]
    %v98 = vld [vmem:[#allocation2 + $0x10] sm:$0xff]
    %v99 = vld [vmem:[#allocation2 + $0x18] sm:$0xff]
    %v100 = vld [vmem:[#allocation2 + $0x20] sm:$0xff]
    %v101 = vld [vmem:[#allocation2 + $0x28] sm:$0xff]
    %v102 = vld [vmem:[#allocation2 + $0x30] sm:$0xff]
    %v103 = vld [vmem:[#allocation2 + $0x38] sm:$0xff]
    %v104 = vld [vmem:[#allocation7] sm:$0xff]
    %v105 = vld [vmem:[#allocation7 + $0x8] sm:$0xff]
    %v106 = vld [vmem:[#allocation7 + $0x10] sm:$0xff]
    %v107 = vld [vmem:[#allocation7 + $0x18] sm:$0xff]
    %v108 = vld [vmem:[#allocation7 + $0x20] sm:$0xff]
    %v109 = vld [vmem:[#allocation7 + $0x28] sm:$0xff]
    %v110 = vld [vmem:[#allocation7 + $0x30] sm:$0xff]
    %v111 = vld [vmem:[#allocation7 + $0x38] sm:$0xff]
    %v112 = vld [vmem:[#allocation7 + $0x40] sm:$0xff]
    %v113 = vld [vmem:[#allocation7 + $0x48] sm:$0xff]
    %v114 = vld [vmem:[#allocation7 + $0x50] sm:$0xff]
    %v115 = vld [vmem:[#allocation7 + $0x58] sm:$0xff]
    %v116 = vld [vmem:[#allocation7 + $0x60] sm:$0xff]
    %v117 = vld [vmem:[#allocation7 + $0x68] sm:$0xff]
    %v118 = vld [vmem:[#allocation7 + $0x70] sm:$0xff]
    %v119 = vld [vmem:[#allocation7 + $0x78] sm:$0xff]
    %v120 = vld [vmem:[%s4] sm:$0x1]
    %v122 = vlaneseq
    %v123 = vshrl.u32 %v122, 7
    %v124 = vsub.s32 0, %v123
    %v125 = vrot.slane %v120, %v124
    %127 = vmatprep.subr.mxu0 0.0
    %128 = vmatpush1.msra.mxu0 %v104
    %129 = vmatprep.subr.mxu0 0.0
    %130 = vmatpush1.msra.mxu0 %v105
    %131 = vmatprep.subr.mxu0 0.0
    %132 = vmatpush1.msra.mxu0 %v106
    %133 = vmatprep.subr.mxu0 0.0
    %134 = vmatpush1.msra.mxu0 %v107
    %135 = vmatprep.subr.mxu0 0.0
    %136 = vmatpush1.msra.mxu0 %v108
    %137 = vmatprep.subr.mxu0 0.0
    %138 = vmatpush1.msra.mxu0 %v109
    %139 = vmatprep.subr.mxu0 0.0
    %140 = vmatpush1.msra.mxu0 %v110
    %141 = vmatprep.subr.mxu0 0.0
    %142 = vmatpush1.msra.mxu0 %v111
    %143 = vmatprep.subr.mxu0 0.0
    %144 = vmatpush1.msra.mxu0 %v112
    %145 = vmatprep.subr.mxu0 0.0
    %146 = vmatpush1.msra.mxu0 %v113
    %147 = vmatprep.subr.mxu0 0.0
    %148 = vmatpush1.msra.mxu0 %v114
    %149 = vmatprep.subr.mxu0 0.0
    %150 = vmatpush1.msra.mxu0 %v115
    %151 = vmatprep.subr.mxu0 0.0
    %152 = vmatpush1.msra.mxu0 %v116
    %153 = vmatprep.subr.mxu0 0.0
    %154 = vmatpush1.msra.mxu0 %v117
    %155 = vmatprep.subr.mxu0 0.0
    %156 = vmatpush1.msra.mxu0 %v118
    %157 = vmatprep.subr.mxu0 0.0
    %158 = vmatpush1.msra.mxu0 %v119
    %159 = vmatprep.subr.mxu0 0.0
    %160 = vmatpush1.msra.mxu0 0.0
    %161 = vmatprep.subr.mxu0 0.0
    %162 = vmatpush1.msra.mxu0 0.0
    %163 = vmatprep.subr.mxu0 0.0
    %164 = vmatpush1.msra.mxu0 0.0
    %165 = vmatprep.subr.mxu0 0.0
    %166 = vmatpush1.msra.mxu0 0.0
    %167 = vmatprep.subr.mxu0 0.0
    %168 = vmatpush1.msra.mxu0 0.0
    %169 = vmatprep.subr.mxu0 0.0
    %170 = vmatpush1.msra.mxu0 0.0
    %171 = vmatprep.subr.mxu0 0.0
    %172 = vmatpush1.msra.mxu0 0.0
    %173 = vmatprep.subr.mxu0 0.0
    %174 = vmatpush1.msra.mxu0 0.0
    %175 = vmatprep.subr.mxu0 0.0
    %176 = vmatpush1.msra.mxu0 0.0
    %177 = vmatprep.subr.mxu0 0.0
    %178 = vmatpush1.msra.mxu0 0.0
    %179 = vmatprep.subr.mxu0 0.0
    %180 = vmatpush1.msra.mxu0 0.0
    %181 = vmatprep.subr.mxu0 0.0
    %182 = vmatpush1.msra.mxu0 0.0
    %183 = vmatprep.subr.mxu0 0.0
    %184 = vmatpush1.msra.mxu0 0.0
    %185 = vmatprep.subr.mxu0 0.0
    %186 = vmatpush1.msra.mxu0 0.0
    %187 = vmatprep.subr.mxu0 0.0
    %188 = vmatpush1.msra.mxu0 0.0
    %189 = vmatprep.subr.mxu0 0.0
    %190 = vmatpush1.msra.mxu0 0.0
    %191 = vmatprep.mubr.f32.mxu0 0.0
    %192 = vmatmul.mubr.f32.gmra.mrb[0].mxu0 %v96
    %v193 = vpop.f32.mrb[0].mxu0
    %v194 = vadd.f32 %v125, %v193
    %v195 = vpop.f32.mrb[0].mxu0
    %196 = vmatprep.mubr.f32.mxu0 0.0
    %197 = vmatmul.mubr.f32.gmra.mrb[0].mxu0 %v97
    %v198 = vpop.f32.mrb[0].mxu0
    %v199 = vadd.f32 %v125, %v198
    %v200 = vpop.f32.mrb[0].mxu0
    %201 = vmatprep.mubr.f32.mxu0 0.0
    %202 = vmatmul.mubr.f32.gmra.mrb[0].mxu0 %v98
    %v203 = vpop.f32.mrb[0].mxu0
    %v204 = vadd.f32 %v125, %v203
    %v205 = vpop.f32.mrb[0].mxu0
    %206 = vmatprep.mubr.f32.mxu0 0.0
    %207 = vmatmul.mubr.f32.gmra.mrb[0].mxu0 %v99
    %v208 = vpop.f32.mrb[0].mxu0
    %v209 = vadd.f32 %v125, %v208
    %v210 = vpop.f32.mrb[0].mxu0
    %211 = vmatprep.mubr.f32.mxu0 0.0
    %212 = vmatmul.mubr.f32.gmra.mrb[0].mxu0 %v100
    %v213 = vpop.f32.mrb[0].mxu0
    %v214 = vadd.f32 %v125, %v213
    %v215 = vpop.f32.mrb[0].mxu0
    %216 = vmatprep.mubr.f32.mxu0 0.0
    %217 = vmatmul.mubr.f32.gmra.mrb[0].mxu0 %v101
    %v218 = vpop.f32.mrb[0].mxu0
    %v219 = vadd.f32 %v125, %v218
    %v220 = vpop.f32.mrb[0].mxu0
    %221 = vmatprep.mubr.f32.mxu0 0.0
    %222 = vmatmul.mubr.f32.gmra.mrb[0].mxu0 %v102
    %v223 = vpop.f32.mrb[0].mxu0
    %v224 = vadd.f32 %v125, %v223
    %v225 = vpop.f32.mrb[0].mxu0
    %226 = vmatprep.mubr.f32.mxu0 0.0
    %227 = vmatmul.mubr.f32.gmra.mrb[0].mxu0 %v103
    %v228 = vpop.f32.mrb[0].mxu0
    %v229 = vadd.f32 %v125, %v228
    %v230 = vpop.f32.mrb[0].mxu0
    %231 = vdwg.mxu0
    %v232 = vld [vmem:[#allocation8] sm:$0xff]
    %v233 = vld [vmem:[#allocation8 + $0x8] sm:$0xff]
    %v234 = vld [vmem:[#allocation8 + $0x10] sm:$0xff]
    %v235 = vld [vmem:[#allocation8 + $0x18] sm:$0xff]
    %v236 = vld [vmem:[#allocation8 + $0x20] sm:$0xff]
    %v237 = vld [vmem:[#allocation8 + $0x28] sm:$0xff]
    %v238 = vld [vmem:[#allocation8 + $0x30] sm:$0xff]
    %v239 = vld [vmem:[#allocation8 + $0x38] sm:$0xff]
    %v240 = vld [vmem:[#allocation8 + $0x40] sm:$0xff]
    %v241 = vld [vmem:[#allocation8 + $0x48] sm:$0xff]
    %v242 = vld [vmem:[#allocation8 + $0x50] sm:$0xff]
    %v243 = vld [vmem:[#allocation8 + $0x58] sm:$0xff]
    %v244 = vld [vmem:[#allocation8 + $0x60] sm:$0xff]
    %v245 = vld [vmem:[#allocation8 + $0x68] sm:$0xff]
    %v246 = vld [vmem:[#allocation8 + $0x70] sm:$0xff]
    %v247 = vld [vmem:[#allocation8 + $0x78] sm:$0xff]
    %v248 = vld [vmem:[#allocation5] sm:$0xff]
    %249 = vmatprep.subr.mxu0 0.0
    %250 = vmatpush1.msra.mxu0 %v232
    %251 = vmatprep.subr.mxu0 0.0
    %252 = vmatpush1.msra.mxu0 %v233
    %253 = vmatprep.subr.mxu0 0.0
    %254 = vmatpush1.msra.mxu0 %v234
    %255 = vmatprep.subr.mxu0 0.0
    %256 = vmatpush1.msra.mxu0 %v235
    %257 = vmatprep.subr.mxu0 0.0
    %258 = vmatpush1.msra.mxu0 %v236
    %259 = vmatprep.subr.mxu0 0.0
    %260 = vmatpush1.msra.mxu0 %v237
    %261 = vmatprep.subr.mxu0 0.0
    %262 = vmatpush1.msra.mxu0 %v238
    %263 = vmatprep.subr.mxu0 0.0
    %264 = vmatpush1.msra.mxu0 %v239
    %265 = vmatprep.subr.mxu0 0.0
    %266 = vmatpush1.msra.mxu0 %v240
    %267 = vmatprep.subr.mxu0 0.0
    %268 = vmatpush1.msra.mxu0 %v241
    %269 = vmatprep.subr.mxu0 0.0
    %270 = vmatpush1.msra.mxu0 %v242
    %271 = vmatprep.subr.mxu0 0.0
    %272 = vmatpush1.msra.mxu0 %v243
    %273 = vmatprep.subr.mxu0 0.0
    %274 = vmatpush1.msra.mxu0 %v244
    %275 = vmatprep.subr.mxu0 0.0
    %276 = vmatpush1.msra.mxu0 %v245
    %277 = vmatprep.subr.mxu0 0.0
    %278 = vmatpush1.msra.mxu0 %v246
    %279 = vmatprep.subr.mxu0 0.0
    %280 = vmatpush1.msra.mxu0 %v247
    %281 = vmatprep.subr.mxu0 0.0
    %282 = vmatpush1.msra.mxu0 0.0
    %283 = vmatprep.subr.mxu0 0.0
    %284 = vmatpush1.msra.mxu0 0.0
    %285 = vmatprep.subr.mxu0 0.0
    %286 = vmatpush1.msra.mxu0 0.0
    %287 = vmatprep.subr.mxu0 0.0
    %288 = vmatpush1.msra.mxu0 0.0
    %289 = vmatprep.subr.mxu0 0.0
    %290 = vmatpush1.msra.mxu0 0.0
    %291 = vmatprep.subr.mxu0 0.0
    %292 = vmatpush1.msra.mxu0 0.0
    %293 = vmatprep.subr.mxu0 0.0
    %294 = vmatpush1.msra.mxu0 0.0
    %295 = vmatprep.subr.mxu0 0.0
    %296 = vmatpush1.msra.mxu0 0.0
    %297 = vmatprep.subr.mxu0 0.0
    %298 = vmatpush1.msra.mxu0 0.0
    %299 = vmatprep.subr.mxu0 0.0
    %300 = vmatpush1.msra.mxu0 0.0
    %301 = vmatprep.subr.mxu0 0.0
    %302 = vmatpush1.msra.mxu0 0.0
    %303 = vmatprep.subr.mxu0 0.0
    %304 = vmatpush1.msra.mxu0 0.0
    %305 = vmatprep.subr.mxu0 0.0
    %306 = vmatpush1.msra.mxu0 0.0
    %307 = vmatprep.subr.mxu0 0.0
    %308 = vmatpush1.msra.mxu0 0.0
    %309 = vmatprep.subr.mxu0 0.0
    %310 = vmatpush1.msra.mxu0 0.0
    %311 = vmatprep.subr.mxu0 0.0
    %312 = vmatpush1.msra.mxu0 0.0
    %313 = vmatprep.mubr.f32.mxu0 0.0
    %314 = vmatmul.mubr.f32.gmra.mrb[0].mxu0 %v248
    %v315 = vpop.f32.mrb[0].mxu0
    %v316 = vadd.f32 0.0, %v315
    %v317 = vpop.f32.mrb[0].mxu0
    %318 = vdwg.mxu0
    %v319 = vadd.f32 %v194, %v316
    %v320 = vtanh.pop %v319
    %321 = vmatprep.subr.mxu0 0.0
    %322 = vmatpush1.msra.mxu0 %v232
    %323 = vmatprep.subr.mxu0 0.0
    %324 = vmatpush1.msra.mxu0 %v233
    %325 = vmatprep.subr.mxu0 0.0
    %326 = vmatpush1.msra.mxu0 %v234
    %327 = vmatprep.subr.mxu0 0.0
    %328 = vmatpush1.msra.mxu0 %v235
    %329 = vmatprep.subr.mxu0 0.0
    %330 = vmatpush1.msra.mxu0 %v236
    %331 = vmatprep.subr.mxu0 0.0
    %332 = vmatpush1.msra.mxu0 %v237
    %333 = vmatprep.subr.mxu0 0.0
    %334 = vmatpush1.msra.mxu0 %v238
    %335 = vmatprep.subr.mxu0 0.0
    %336 = vmatpush1.msra.mxu0 %v239
    %337 = vmatprep.subr.mxu0 0.0
    %338 = vmatpush1.msra.mxu0 %v240
    %339 = vmatprep.subr.mxu0 0.0
    %340 = vmatpush1.msra.mxu0 %v241
    %341 = vmatprep.subr.mxu0 0.0
    %342 = vmatpush1.msra.mxu0 %v242
    %343 = vmatprep.subr.mxu0 0.0
    %344 = vmatpush1.msra.mxu0 %v243
    %345 = vmatprep.subr.mxu0 0.0
    %346 = vmatpush1.msra.mxu0 %v244
    %347 = vmatprep.subr.mxu0 0.0
    %348 = vmatpush1.msra.mxu0 %v245
    %349 = vmatprep.subr.mxu0 0.0
    %350 = vmatpush1.msra.mxu0 %v246
    %351 = vmatprep.subr.mxu0 0.0
    %352 = vmatpush1.msra.mxu0 %v247
    %353 = vmatprep.subr.mxu0 0.0
    %354 = vmatpush1.msra.mxu0 0.0
    %355 = vmatprep.subr.mxu0 0.0
    %356 = vmatpush1.msra.mxu0 0.0
    %357 = vmatprep.subr.mxu0 0.0
    %358 = vmatpush1.msra.mxu0 0.0
    %359 = vmatprep.subr.mxu0 0.0
    %360 = vmatpush1.msra.mxu0 0.0
    %361 = vmatprep.subr.mxu0 0.0
    %362 = vmatpush1.msra.mxu0 0.0
    %363 = vmatprep.subr.mxu0 0.0
    %364 = vmatpush1.msra.mxu0 0.0
    %365 = vmatprep.subr.mxu0 0.0
    %366 = vmatpush1.msra.mxu0 0.0
    %367 = vmatprep.subr.mxu0 0.0
    %368 = vmatpush1.msra.mxu0 0.0
    %369 = vmatprep.subr.mxu0 0.0
    %370 = vmatpush1.msra.mxu0 0.0
    %371 = vmatprep.subr.mxu0 0.0
    %372 = vmatpush1.msra.mxu0 0.0
    %373 = vmatprep.subr.mxu0 0.0
    %374 = vmatpush1.msra.mxu0 0.0
    %375 = vmatprep.subr.mxu0 0.0
    %376 = vmatpush1.msra.mxu0 0.0
    %377 = vmatprep.subr.mxu0 0.0
    %378 = vmatpush1.msra.mxu0 0.0
    %379 = vmatprep.subr.mxu0 0.0
    %380 = vmatpush1.msra.mxu0 0.0
    %381 = vmatprep.subr.mxu0 0.0
    %382 = vmatpush1.msra.mxu0 0.0
    %383 = vmatprep.subr.mxu0 0.0
    %384 = vmatpush1.msra.mxu0 0.0
    %385 = vmatprep.mubr.f32.mxu0 0.0
    %386 = vmatmul.mubr.f32.gmra.mrb[0].mxu0 %v320
    %v387 = vpop.f32.mrb[0].mxu0
    %v388 = vadd.f32 0.0, %v387
    %v389 = vpop.f32.mrb[0].mxu0
    %390 = vdwg.mxu0
    %v391 = vadd.f32 %v199, %v388
    %v392 = vtanh.pop %v391
    %393 = vmatprep.subr.mxu0 0.0
    %394 = vmatpush1.msra.mxu0 %v232
    %395 = vmatprep.subr.mxu0 0.0
    %396 = vmatpush1.msra.mxu0 %v233
    %397 = vmatprep.subr.mxu0 0.0
    %398 = vmatpush1.msra.mxu0 %v234
    %399 = vmatprep.subr.mxu0 0.0
    %400 = vmatpush1.msra.mxu0 %v235
    %401 = vmatprep.subr.mxu0 0.0
    %402 = vmatpush1.msra.mxu0 %v236
    %403 = vmatprep.subr.mxu0 0.0
    %404 = vmatpush1.msra.mxu0 %v237
    %405 = vmatprep.subr.mxu0 0.0
    %406 = vmatpush1.msra.mxu0 %v238
    %407 = vmatprep.subr.mxu0 0.0
    %408 = vmatpush1.msra.mxu0 %v239
    %409 = vmatprep.subr.mxu0 0.0
    %410 = vmatpush1.msra.mxu0 %v240
    %411 = vmatprep.subr.mxu0 0.0
    %412 = vmatpush1.msra.mxu0 %v241
    %413 = vmatprep.subr.mxu0 0.0
    %414 = vmatpush1.msra.mxu0 %v242
    %415 = vmatprep.subr.mxu0 0.0
    %416 = vmatpush1.msra.mxu0 %v243
    %417 = vmatprep.subr.mxu0 0.0
    %418 = vmatpush1.msra.mxu0 %v244
    %419 = vmatprep.subr.mxu0 0.0
    %420 = vmatpush1.msra.mxu0 %v245
    %421 = vmatprep.subr.mxu0 0.0
    %422 = vmatpush1.msra.mxu0 %v246
    %423 = vmatprep.subr.mxu0 0.0
    %424 = vmatpush1.msra.mxu0 %v247
    %425 = vmatprep.subr.mxu0 0.0
    %426 = vmatpush1.msra.mxu0 0.0
    %427 = vmatprep.subr.mxu0 0.0
    %428 = vmatpush1.msra.mxu0 0.0
    %429 = vmatprep.subr.mxu0 0.0
    %430 = vmatpush1.msra.mxu0 0.0
    %431 = vmatprep.subr.mxu0 0.0
    %432 = vmatpush1.msra.mxu0 0.0
    %433 = vmatprep.subr.mxu0 0.0
    %434 = vmatpush1.msra.mxu0 0.0
    %435 = vmatprep.subr.mxu0 0.0
    %436 = vmatpush1.msra.mxu0 0.0
    %437 = vmatprep.subr.mxu0 0.0
    %438 = vmatpush1.msra.mxu0 0.0
    %439 = vmatprep.subr.mxu0 0.0
    %440 = vmatpush1.msra.mxu0 0.0
    %441 = vmatprep.subr.mxu0 0.0
    %442 = vmatpush1.msra.mxu0 0.0
    %443 = vmatprep.subr.mxu0 0.0
    %444 = vmatpush1.msra.mxu0 0.0
    %445 = vmatprep.subr.mxu0 0.0
    %446 = vmatpush1.msra.mxu0 0.0
    %447 = vmatprep.subr.mxu0 0.0
    %448 = vmatpush1.msra.mxu0 0.0
    %449 = vmatprep.subr.mxu0 0.0
    %450 = vmatpush1.msra.mxu0 0.0
    %451 = vmatprep.subr.mxu0 0.0
    %452 = vmatpush1.msra.mxu0 0.0
    %453 = vmatprep.subr.mxu0 0.0
    %454 = vmatpush1.msra.mxu0 0.0
    %455 = vmatprep.subr.mxu0 0.0
    %456 = vmatpush1.msra.mxu0 0.0
    %457 = vmatprep.mubr.f32.mxu0 0.0
    %458 = vmatmul.mubr.f32.gmra.mrb[0].mxu0 %v392
    %v459 = vpop.f32.mrb[0].mxu0
    %v460 = vadd.f32 0.0, %v459
    %v461 = vpop.f32.mrb[0].mxu0
    %462 = vdwg.mxu0
    %v463 = vadd.f32 %v204, %v460
    %v464 = vtanh.pop %v463
    %465 = vmatprep.subr.mxu0 0.0
    %466 = vmatpush1.msra.mxu0 %v232
    %467 = vmatprep.subr.mxu0 0.0
    %468 = vmatpush1.msra.mxu0 %v233
    %469 = vmatprep.subr.mxu0 0.0
    %470 = vmatpush1.msra.mxu0 %v234
    %471 = vmatprep.subr.mxu0 0.0
    %472 = vmatpush1.msra.mxu0 %v235
    %473 = vmatprep.subr.mxu0 0.0
    %474 = vmatpush1.msra.mxu0 %v236
    %475 = vmatprep.subr.mxu0 0.0
    %476 = vmatpush1.msra.mxu0 %v237
    %477 = vmatprep.subr.mxu0 0.0
    %478 = vmatpush1.msra.mxu0 %v238
    %479 = vmatprep.subr.mxu0 0.0
    %480 = vmatpush1.msra.mxu0 %v239
    %481 = vmatprep.subr.mxu0 0.0
    %482 = vmatpush1.msra.mxu0 %v240
    %483 = vmatprep.subr.mxu0 0.0
    %484 = vmatpush1.msra.mxu0 %v241
    %485 = vmatprep.subr.mxu0 0.0
    %486 = vmatpush1.msra.mxu0 %v242
    %487 = vmatprep.subr.mxu0 0.0
    %488 = vmatpush1.msra.mxu0 %v243
    %489 = vmatprep.subr.mxu0 0.0
    %490 = vmatpush1.msra.mxu0 %v244
    %491 = vmatprep.subr.mxu0 0.0
    %492 = vmatpush1.msra.mxu0 %v245
    %493 = vmatprep.subr.mxu0 0.0
    %494 = vmatpush1.msra.mxu0 %v246
    %495 = vmatprep.subr.mxu0 0.0
    %496 = vmatpush1.msra.mxu0 %v247
    %497 = vmatprep.subr.mxu0 0.0
    %498 = vmatpush1.msra.mxu0 0.0
    %499 = vmatprep.subr.mxu0 0.0
    %500 = vmatpush1.msra.mxu0 0.0
    %501 = vmatprep.subr.mxu0 0.0
    %502 = vmatpush1.msra.mxu0 0.0
    %503 = vmatprep.subr.mxu0 0.0
    %504 = vmatpush1.msra.mxu0 0.0
    %505 = vmatprep.subr.mxu0 0.0
    %506 = vmatpush1.msra.mxu0 0.0
    %507 = vmatprep.subr.mxu0 0.0
    %508 = vmatpush1.msra.mxu0 0.0
    %509 = vmatprep.subr.mxu0 0.0
    %510 = vmatpush1.msra.mxu0 0.0
    %511 = vmatprep.subr.mxu0 0.0
    %512 = vmatpush1.msra.mxu0 0.0
    %513 = vmatprep.subr.mxu0 0.0
    %514 = vmatpush1.msra.mxu0 0.0
    %515 = vmatprep.subr.mxu0 0.0
    %516 = vmatpush1.msra.mxu0 0.0
    %517 = vmatprep.subr.mxu0 0.0
    %518 = vmatpush1.msra.mxu0 0.0
    %519 = vmatprep.subr.mxu0 0.0
    %520 = vmatpush1.msra.mxu0 0.0
    %521 = vmatprep.subr.mxu0 0.0
    %522 = vmatpush1.msra.mxu0 0.0
    %523 = vmatprep.subr.mxu0 0.0
    %524 = vmatpush1.msra.mxu0 0.0
    %525 = vmatprep.subr.mxu0 0.0
    %526 = vmatpush1.msra.mxu0 0.0
    %527 = vmatprep.subr.mxu0 0.0
    %528 = vmatpush1.msra.mxu0 0.0
    %529 = vmatprep.mubr.f32.mxu0 0.0
    %530 = vmatmul.mubr.f32.gmra.mrb[0].mxu0 %v464
    %v531 = vpop.f32.mrb[0].mxu0
    %v532 = vadd.f32 0.0, %v531
    %v533 = vpop.f32.mrb[0].mxu0
    %534 = vdwg.mxu0
    %v535 = vadd.f32 %v209, %v532
    %v536 = vtanh.pop %v535
    %537 = vmatprep.subr.mxu0 0.0
    %538 = vmatpush1.msra.mxu0 %v232
    %539 = vmatprep.subr.mxu0 0.0
    %540 = vmatpush1.msra.mxu0 %v233
    %541 = vmatprep.subr.mxu0 0.0
    %542 = vmatpush1.msra.mxu0 %v234
    %543 = vmatprep.subr.mxu0 0.0
    %544 = vmatpush1.msra.mxu0 %v235
    %545 = vmatprep.subr.mxu0 0.0
    %546 = vmatpush1.msra.mxu0 %v236
    %547 = vmatprep.subr.mxu0 0.0
    %548 = vmatpush1.msra.mxu0 %v237
    %549 = vmatprep.subr.mxu0 0.0
    %550 = vmatpush1.msra.mxu0 %v238
    %551 = vmatprep.subr.mxu0 0.0
    %552 = vmatpush1.msra.mxu0 %v239
    %553 = vmatprep.subr.mxu0 0.0
    %554 = vmatpush1.msra.mxu0 %v240
    %555 = vmatprep.subr.mxu0 0.0
    %556 = vmatpush1.msra.mxu0 %v241
    %557 = vmatprep.subr.mxu0 0.0
    %558 = vmatpush1.msra.mxu0 %v242
    %559 = vmatprep.subr.mxu0 0.0
    %560 = vmatpush1.msra.mxu0 %v243
    %561 = vmatprep.subr.mxu0 0.0
    %562 = vmatpush1.msra.mxu0 %v244
    %563 = vmatprep.subr.mxu0 0.0
    %564 = vmatpush1.msra.mxu0 %v245
    %565 = vmatprep.subr.mxu0 0.0
    %566 = vmatpush1.msra.mxu0 %v246
    %567 = vmatprep.subr.mxu0 0.0
    %568 = vmatpush1.msra.mxu0 %v247
    %569 = vmatprep.subr.mxu0 0.0
    %570 = vmatpush1.msra.mxu0 0.0
    %571 = vmatprep.subr.mxu0 0.0
    %572 = vmatpush1.msra.mxu0 0.0
    %573 = vmatprep.subr.mxu0 0.0
    %574 = vmatpush1.msra.mxu0 0.0
    %575 = vmatprep.subr.mxu0 0.0
    %576 = vmatpush1.msra.mxu0 0.0
    %577 = vmatprep.subr.mxu0 0.0
    %578 = vmatpush1.msra.mxu0 0.0
    %579 = vmatprep.subr.mxu0 0.0
    %580 = vmatpush1.msra.mxu0 0.0
    %581 = vmatprep.subr.mxu0 0.0
    %582 = vmatpush1.msra.mxu0 0.0
    %583 = vmatprep.subr.mxu0 0.0
    %584 = vmatpush1.msra.mxu0 0.0
    %585 = vmatprep.subr.mxu0 0.0
    %586 = vmatpush1.msra.mxu0 0.0
    %587 = vmatprep.subr.mxu0 0.0
    %588 = vmatpush1.msra.mxu0 0.0
    %589 = vmatprep.subr.mxu0 0.0
    %590 = vmatpush1.msra.mxu0 0.0
    %591 = vmatprep.subr.mxu0 0.0
    %592 = vmatpush1.msra.mxu0 0.0
    %593 = vmatprep.subr.mxu0 0.0
    %594 = vmatpush1.msra.mxu0 0.0
    %595 = vmatprep.subr.mxu0 0.0
    %596 = vmatpush1.msra.mxu0 0.0
    %597 = vmatprep.subr.mxu0 0.0
    %598 = vmatpush1.msra.mxu0 0.0
    %599 = vmatprep.subr.mxu0 0.0
    %600 = vmatpush1.msra.mxu0 0.0
    %601 = vmatprep.mubr.f32.mxu0 0.0
    %602 = vmatmul.mubr.f32.gmra.mrb[0].mxu0 %v536
    %v603 = vpop.f32.mrb[0].mxu0
    %v604 = vadd.f32 0.0, %v603
    %v605 = vpop.f32.mrb[0].mxu0
    %606 = vdwg.mxu0
    %v607 = vadd.f32 %v214, %v604
    %v608 = vtanh.pop %v607
    %609 = vmatprep.subr.mxu0 0.0
    %610 = vmatpush1.msra.mxu0 %v232
    %611 = vmatprep.subr.mxu0 0.0
    %612 = vmatpush1.msra.mxu0 %v233
    %613 = vmatprep.subr.mxu0 0.0
    %614 = vmatpush1.msra.mxu0 %v234
    %615 = vmatprep.subr.mxu0 0.0
    %616 = vmatpush1.msra.mxu0 %v235
    %617 = vmatprep.subr.mxu0 0.0
    %618 = vmatpush1.msra.mxu0 %v236
    %619 = vmatprep.subr.mxu0 0.0
    %620 = vmatpush1.msra.mxu0 %v237
    %621 = vmatprep.subr.mxu0 0.0
    %622 = vmatpush1.msra.mxu0 %v238
    %623 = vmatprep.subr.mxu0 0.0
    %624 = vmatpush1.msra.mxu0 %v239
    %625 = vmatprep.subr.mxu0 0.0
    %626 = vmatpush1.msra.mxu0 %v240
    %627 = vmatprep.subr.mxu0 0.0
    %628 = vmatpush1.msra.mxu0 %v241
    %629 = vmatprep.subr.mxu0 0.0
    %630 = vmatpush1.msra.mxu0 %v242
    %631 = vmatprep.subr.mxu0 0.0
    %632 = vmatpush1.msra.mxu0 %v243
    %633 = vmatprep.subr.mxu0 0.0
    %634 = vmatpush1.msra.mxu0 %v244
    %635 = vmatprep.subr.mxu0 0.0
    %636 = vmatpush1.msra.mxu0 %v245
    %637 = vmatprep.subr.mxu0 0.0
    %638 = vmatpush1.msra.mxu0 %v246
    %639 = vmatprep.subr.mxu0 0.0
    %640 = vmatpush1.msra.mxu0 %v247
    %641 = vmatprep.subr.mxu0 0.0
    %642 = vmatpush1.msra.mxu0 0.0
    %643 = vmatprep.subr.mxu0 0.0
    %644 = vmatpush1.msra.mxu0 0.0
    %645 = vmatprep.subr.mxu0 0.0
    %646 = vmatpush1.msra.mxu0 0.0
    %647 = vmatprep.subr.mxu0 0.0
    %648 = vmatpush1.msra.mxu0 0.0
    %649 = vmatprep.subr.mxu0 0.0
    %650 = vmatpush1.msra.mxu0 0.0
    %651 = vmatprep.subr.mxu0 0.0
    %652 = vmatpush1.msra.mxu0 0.0
    %653 = vmatprep.subr.mxu0 0.0
    %654 = vmatpush1.msra.mxu0 0.0
    %655 = vmatprep.subr.mxu0 0.0
    %656 = vmatpush1.msra.mxu0 0.0
    %657 = vmatprep.subr.mxu0 0.0
    %658 = vmatpush1.msra.mxu0 0.0
    %659 = vmatprep.subr.mxu0 0.0
    %660 = vmatpush1.msra.mxu0 0.0
    %661 = vmatprep.subr.mxu0 0.0
    %662 = vmatpush1.msra.mxu0 0.0
    %663 = vmatprep.subr.mxu0 0.0
    %664 = vmatpush1.msra.mxu0 0.0
    %665 = vmatprep.subr.mxu0 0.0
    %666 = vmatpush1.msra.mxu0 0.0
    %667 = vmatprep.subr.mxu0 0.0
    %668 = vmatpush1.msra.mxu0 0.0
    %669 = vmatprep.subr.mxu0 0.0
    %670 = vmatpush1.msra.mxu0 0.0
    %671 = vmatprep.subr.mxu0 0.0
    %672 = vmatpush1.msra.mxu0 0.0
    %673 = vmatprep.mubr.f32.mxu0 0.0
    %674 = vmatmul.mubr.f32.gmra.mrb[0].mxu0 %v608
    %v675 = vpop.f32.mrb[0].mxu0
    %v676 = vadd.f32 0.0, %v675
    %v677 = vpop.f32.mrb[0].mxu0
    %678 = vdwg.mxu0
    %v679 = vadd.f32 %v219, %v676
    %v680 = vtanh.pop %v679
    %681 = vmatprep.subr.mxu0 0.0
    %682 = vmatpush1.msra.mxu0 %v232
    %683 = vmatprep.subr.mxu0 0.0
    %684 = vmatpush1.msra.mxu0 %v233
    %685 = vmatprep.subr.mxu0 0.0
    %686 = vmatpush1.msra.mxu0 %v234
    %687 = vmatprep.subr.mxu0 0.0
    %688 = vmatpush1.msra.mxu0 %v235
    %689 = vmatprep.subr.mxu0 0.0
    %690 = vmatpush1.msra.mxu0 %v236
    %691 = vmatprep.subr.mxu0 0.0
    %692 = vmatpush1.msra.mxu0 %v237
    %693 = vmatprep.subr.mxu0 0.0
    %694 = vmatpush1.msra.mxu0 %v238
    %695 = vmatprep.subr.mxu0 0.0
    %696 = vmatpush1.msra.mxu0 %v239
    %697 = vmatprep.subr.mxu0 0.0
    %698 = vmatpush1.msra.mxu0 %v240
    %699 = vmatprep.subr.mxu0 0.0
    %700 = vmatpush1.msra.mxu0 %v241
    %701 = vmatprep.subr.mxu0 0.0
    %702 = vmatpush1.msra.mxu0 %v242
    %703 = vmatprep.subr.mxu0 0.0
    %704 = vmatpush1.msra.mxu0 %v243
    %705 = vmatprep.subr.mxu0 0.0
    %706 = vmatpush1.msra.mxu0 %v244
    %707 = vmatprep.subr.mxu0 0.0
    %708 = vmatpush1.msra.mxu0 %v245
    %709 = vmatprep.subr.mxu0 0.0
    %710 = vmatpush1.msra.mxu0 %v246
    %711 = vmatprep.subr.mxu0 0.0
    %712 = vmatpush1.msra.mxu0 %v247
    %713 = vmatprep.subr.mxu0 0.0
    %714 = vmatpush1.msra.mxu0 0.0
    %715 = vmatprep.subr.mxu0 0.0
    %716 = vmatpush1.msra.mxu0 0.0
    %717 = vmatprep.subr.mxu0 0.0
    %718 = vmatpush1.msra.mxu0 0.0
    %719 = vmatprep.subr.mxu0 0.0
    %720 = vmatpush1.msra.mxu0 0.0
    %721 = vmatprep.subr.mxu0 0.0
    %722 = vmatpush1.msra.mxu0 0.0
    %723 = vmatprep.subr.mxu0 0.0
    %724 = vmatpush1.msra.mxu0 0.0
    %725 = vmatprep.subr.mxu0 0.0
    %726 = vmatpush1.msra.mxu0 0.0
    %727 = vmatprep.subr.mxu0 0.0
    %728 = vmatpush1.msra.mxu0 0.0
    %729 = vmatprep.subr.mxu0 0.0
    %730 = vmatpush1.msra.mxu0 0.0
    %731 = vmatprep.subr.mxu0 0.0
    %732 = vmatpush1.msra.mxu0 0.0
    %733 = vmatprep.subr.mxu0 0.0
    %734 = vmatpush1.msra.mxu0 0.0
    %735 = vmatprep.subr.mxu0 0.0
    %736 = vmatpush1.msra.mxu0 0.0
    %737 = vmatprep.subr.mxu0 0.0
    %738 = vmatpush1.msra.mxu0 0.0
    %739 = vmatprep.subr.mxu0 0.0
    %740 = vmatpush1.msra.mxu0 0.0
    %741 = vmatprep.subr.mxu0 0.0
    %742 = vmatpush1.msra.mxu0 0.0
    %743 = vmatprep.subr.mxu0 0.0
    %744 = vmatpush1.msra.mxu0 0.0
    %745 = vmatprep.mubr.f32.mxu0 0.0
    %746 = vmatmul.mubr.f32.gmra.mrb[0].mxu0 %v680
    %v747 = vpop.f32.mrb[0].mxu0
    %v748 = vadd.f32 0.0, %v747
    %v749 = vpop.f32.mrb[0].mxu0
    %750 = vdwg.mxu0
    %v751 = vadd.f32 %v224, %v748
    %v752 = vtanh.pop %v751
    %753 = vmatprep.subr.mxu0 0.0
    %754 = vmatpush1.msra.mxu0 %v232
    %755 = vmatprep.subr.mxu0 0.0
    %756 = vmatpush1.msra.mxu0 %v233
    %757 = vmatprep.subr.mxu0 0.0
    %758 = vmatpush1.msra.mxu0 %v234
    %759 = vmatprep.subr.mxu0 0.0
    %760 = vmatpush1.msra.mxu0 %v235
    %761 = vmatprep.subr.mxu0 0.0
    %762 = vmatpush1.msra.mxu0 %v236
    %763 = vmatprep.subr.mxu0 0.0
    %764 = vmatpush1.msra.mxu0 %v237
    %765 = vmatprep.subr.mxu0 0.0
    %766 = vmatpush1.msra.mxu0 %v238
    %767 = vmatprep.subr.mxu0 0.0
    %768 = vmatpush1.msra.mxu0 %v239
    %769 = vmatprep.subr.mxu0 0.0
    %770 = vmatpush1.msra.mxu0 %v240
    %771 = vmatprep.subr.mxu0 0.0
    %772 = vmatpush1.msra.mxu0 %v241
    %773 = vmatprep.subr.mxu0 0.0
    %774 = vmatpush1.msra.mxu0 %v242
    %775 = vmatprep.subr.mxu0 0.0
    %776 = vmatpush1.msra.mxu0 %v243
    %777 = vmatprep.subr.mxu0 0.0
    %778 = vmatpush1.msra.mxu0 %v244
    %779 = vmatprep.subr.mxu0 0.0
    %780 = vmatpush1.msra.mxu0 %v245
    %781 = vmatprep.subr.mxu0 0.0
    %782 = vmatpush1.msra.mxu0 %v246
    %783 = vmatprep.subr.mxu0 0.0
    %784 = vmatpush1.msra.mxu0 %v247
    %785 = vmatprep.subr.mxu0 0.0
    %786 = vmatpush1.msra.mxu0 0.0
    %787 = vmatprep.subr.mxu0 0.0
    %788 = vmatpush1.msra.mxu0 0.0
    %789 = vmatprep.subr.mxu0 0.0
    %790 = vmatpush1.msra.mxu0 0.0
    %791 = vmatprep.subr.mxu0 0.0
    %792 = vmatpush1.msra.mxu0 0.0
    %793 = vmatprep.subr.mxu0 0.0
    %794 = vmatpush1.msra.mxu0 0.0
    %795 = vmatprep.subr.mxu0 0.0
    %796 = vmatpush1.msra.mxu0 0.0
    %797 = vmatprep.subr.mxu0 0.0
    %798 = vmatpush1.msra.mxu0 0.0
    %799 = vmatprep.subr.mxu0 0.0
    %800 = vmatpush1.msra.mxu0 0.0
    %801 = vmatprep.subr.mxu0 0.0
    %802 = vmatpush1.msra.mxu0 0.0
    %803 = vmatprep.subr.mxu0 0.0
    %804 = vmatpush1.msra.mxu0 0.0
    %805 = vmatprep.subr.mxu0 0.0
    %806 = vmatpush1.msra.mxu0 0.0
    %807 = vmatprep.subr.mxu0 0.0
    %808 = vmatpush1.msra.mxu0 0.0
    %809 = vmatprep.subr.mxu0 0.0
    %810 = vmatpush1.msra.mxu0 0.0
    %811 = vmatprep.subr.mxu0 0.0
    %812 = vmatpush1.msra.mxu0 0.0
    %813 = vmatprep.subr.mxu0 0.0
    %814 = vmatpush1.msra.mxu0 0.0
    %815 = vmatprep.subr.mxu0 0.0
    %816 = vmatpush1.msra.mxu0 0.0
    %817 = vmatprep.mubr.f32.mxu0 0.0
    %818 = vmatmul.mubr.f32.gmra.mrb[0].mxu0 %v752
    %v819 = vpop.f32.mrb[0].mxu0
    %v820 = vadd.f32 0.0, %v819
    %v821 = vpop.f32.mrb[0].mxu0
    %822 = vdwg.mxu0
    %v823 = vadd.f32 %v229, %v820
    %v824 = vtanh.pop %v823
    %825 = vst [vmem:[#allocation12] sm:$0xff] %v824
    %v826 = vld [vmem:[#allocation10] sm:$0xff]
    %v827 = vld [vmem:[#allocation10 + $0x8] sm:$0xff]
    %v828 = vld [vmem:[#allocation10 + $0x10] sm:$0xff]
    %v829 = vld [vmem:[#allocation10 + $0x18] sm:$0xff]
    %v830 = vld [vmem:[#allocation10 + $0x20] sm:$0xff]
    %v831 = vld [vmem:[#allocation10 + $0x28] sm:$0xff]
    %v832 = vld [vmem:[#allocation10 + $0x30] sm:$0xff]
    %v833 = vld [vmem:[#allocation10 + $0x38] sm:$0xff]
    %v834 = vld [vmem:[#allocation10 + $0x40] sm:$0xff]
    %v835 = vld [vmem:[#allocation10 + $0x48] sm:$0xff]
    %v836 = vld [vmem:[#allocation10 + $0x50] sm:$0xff]
    %v837 = vld [vmem:[#allocation10 + $0x58] sm:$0xff]
    %v838 = vld [vmem:[#allocation10 + $0x60] sm:$0xff]
    %v839 = vld [vmem:[#allocation10 + $0x68] sm:$0xff]
    %v840 = vld [vmem:[#allocation10 + $0x70] sm:$0xff]
    %v841 = vld [vmem:[#allocation10 + $0x78] sm:$0xff]
    %v842 = vld [vmem:[%s6] sm:$0x1]
    %v844 = vlaneseq
    %v845 = vshrl.u32 %v844, 7
    %v846 = vsub.s32 0, %v845
    %v847 = vrot.slane %v842, %v846
    %849 = vmatprep.subr.mxu0 0.0
    %850 = vmatpush1.msra.mxu0 %v826
    %851 = vmatprep.subr.mxu0 0.0
    %852 = vmatpush1.msra.mxu0 %v827
    %853 = vmatprep.subr.mxu0 0.0
    %854 = vmatpush1.msra.mxu0 %v828
    %855 = vmatprep.subr.mxu0 0.0
    %856 = vmatpush1.msra.mxu0 %v829
    %857 = vmatprep.subr.mxu0 0.0
    %858 = vmatpush1.msra.mxu0 %v830
    %859 = vmatprep.subr.mxu0 0.0
    %860 = vmatpush1.msra.mxu0 %v831
    %861 = vmatprep.subr.mxu0 0.0
    %862 = vmatpush1.msra.mxu0 %v832
    %863 = vmatprep.subr.mxu0 0.0
    %864 = vmatpush1.msra.mxu0 %v833
    %865 = vmatprep.subr.mxu0 0.0
    %866 = vmatpush1.msra.mxu0 %v834
    %867 = vmatprep.subr.mxu0 0.0
    %868 = vmatpush1.msra.mxu0 %v835
    %869 = vmatprep.subr.mxu0 0.0
    %870 = vmatpush1.msra.mxu0 %v836
    %871 = vmatprep.subr.mxu0 0.0
    %872 = vmatpush1.msra.mxu0 %v837
    %873 = vmatprep.subr.mxu0 0.0
    %874 = vmatpush1.msra.mxu0 %v838
    %875 = vmatprep.subr.mxu0 0.0
    %876 = vmatpush1.msra.mxu0 %v839
    %877 = vmatprep.subr.mxu0 0.0
    %878 = vmatpush1.msra.mxu0 %v840
    %879 = vmatprep.subr.mxu0 0.0
    %880 = vmatpush1.msra.mxu0 %v841
    %881 = vmatprep.subr.mxu0 0.0
    %882 = vmatpush1.msra.mxu0 0.0
    %883 = vmatprep.subr.mxu0 0.0
    %884 = vmatpush1.msra.mxu0 0.0
    %885 = vmatprep.subr.mxu0 0.0
    %886 = vmatpush1.msra.mxu0 0.0
    %887 = vmatprep.subr.mxu0 0.0
    %888 = vmatpush1.msra.mxu0 0.0
    %889 = vmatprep.subr.mxu0 0.0
    %890 = vmatpush1.msra.mxu0 0.0
    %891 = vmatprep.subr.mxu0 0.0
    %892 = vmatpush1.msra.mxu0 0.0
    %893 = vmatprep.subr.mxu0 0.0
    %894 = vmatpush1.msra.mxu0 0.0
    %895 = vmatprep.subr.mxu0 0.0
    %896 = vmatpush1.msra.mxu0 0.0
    %897 = vmatprep.subr.mxu0 0.0
    %898 = vmatpush1.msra.mxu0 0.0
    %899 = vmatprep.subr.mxu0 0.0
    %900 = vmatpush1.msra.mxu0 0.0
    %901 = vmatprep.subr.mxu0 0.0
    %902 = vmatpush1.msra.mxu0 0.0
    %903 = vmatprep.subr.mxu0 0.0
    %904 = vmatpush1.msra.mxu0 0.0
    %905 = vmatprep.subr.mxu0 0.0
    %906 = vmatpush1.msra.mxu0 0.0
    %907 = vmatprep.subr.mxu0 0.0
    %908 = vmatpush1.msra.mxu0 0.0
    %909 = vmatprep.subr.mxu0 0.0
    %910 = vmatpush1.msra.mxu0 0.0
    %911 = vmatprep.subr.mxu0 0.0
    %912 = vmatpush1.msra.mxu0 0.0
    %913 = vmatprep.mubr.f32.mxu0 0.0
    %914 = vmatmul.mubr.f32.gmra.mrb[0].mxu0 %v320
    %v915 = vpop.f32.mrb[0].mxu0
    %v916 = vadd.f32 %v847, %v915
    %v917 = vpop.f32.mrb[0].mxu0
    %918 = vmatprep.mubr.f32.mxu0 0.0
    %919 = vmatmul.mubr.f32.gmra.mrb[0].mxu0 %v392
    %v920 = vpop.f32.mrb[0].mxu0
    %v921 = vadd.f32 %v847, %v920
    %v922 = vpop.f32.mrb[0].mxu0
    %923 = vmatprep.mubr.f32.mxu0 0.0
    %924 = vmatmul.mubr.f32.gmra.mrb[0].mxu0 %v464
    %v925 = vpop.f32.mrb[0].mxu0
    %v926 = vadd.f32 %v847, %v925
    %v927 = vpop.f32.mrb[0].mxu0
    %928 = vmatprep.mubr.f32.mxu0 0.0
    %929 = vmatmul.mubr.f32.gmra.mrb[0].mxu0 %v536
    %v930 = vpop.f32.mrb[0].mxu0
    %v931 = vadd.f32 %v847, %v930
    %v932 = vpop.f32.mrb[0].mxu0
    %933 = vmatprep.mubr.f32.mxu0 0.0
    %934 = vmatmul.mubr.f32.gmra.mrb[0].mxu0 %v608
    %v935 = vpop.f32.mrb[0].mxu0
    %v936 = vadd.f32 %v847, %v935
    %v937 = vpop.f32.mrb[0].mxu0
    %938 = vmatprep.mubr.f32.mxu0 0.0
    %939 = vmatmul.mubr.f32.gmra.mrb[0].mxu0 %v680
    %v940 = vpop.f32.mrb[0].mxu0
    %v941 = vadd.f32 %v847, %v940
    %v942 = vpop.f32.mrb[0].mxu0
    %943 = vmatprep.mubr.f32.mxu0 0.0
    %944 = vmatmul.mubr.f32.gmra.mrb[0].mxu0 %v752
    %v945 = vpop.f32.mrb[0].mxu0
    %v946 = vadd.f32 %v847, %v945
    %v947 = vpop.f32.mrb[0].mxu0
    %948 = vmatprep.mubr.f32.mxu0 0.0
    %949 = vmatmul.mubr.f32.gmra.mrb[0].mxu0 %v824
    %v950 = vpop.f32.mrb[0].mxu0
    %v951 = vadd.f32 %v847, %v950
    %v952 = vpop.f32.mrb[0].mxu0
    %953 = vdwg.mxu0
    %954 = vst [vmem:[#allocation11] sm:$0xff] %v916
    %955 = vst [vmem:[#allocation11 + $0x8] sm:$0xff] %v921
    %956 = vst [vmem:[#allocation11 + $0x10] sm:$0xff] %v926
    %957 = vst [vmem:[#allocation11 + $0x18] sm:$0xff] %v931
    %958 = vst [vmem:[#allocation11 + $0x20] sm:$0xff] %v936
    %959 = vst [vmem:[#allocation11 + $0x28] sm:$0xff] %v941
    %960 = vst [vmem:[#allocation11 + $0x30] sm:$0xff] %v946
    %961 = vst [vmem:[#allocation11 + $0x38] sm:$0xff] %v951
    // Predicated region
    $region50: #{tpu_custom_call.1} parent=1 // pred_check
      _
    $region51: #{tpu_custom_call.1} parent=1 // pred_check_branch
      %963 = sbr.rel (0) target = $region53
    $region52: #{tpu_custom_call.1} parent=1 // pred_region
      %s965 = ssub.s32 1024, 1024
      %966 = vsyncadd [#allocation4], %s965
      %s967 = sshll.u32 [#allocation11], 4
      %s968 = int_to_ptr.vmem [resolvable:$true] %s967
      %973 = dma.vmem_to_hbm [thread:$0]  %s968, 1024, %s7, [#allocation4], 128, 128, 8
    $region53: #{tpu_custom_call.1} parent=1 // pred_fallthru
      _
    // Predicated region
    $region54: #{tpu_custom_call.1} parent=1 // pred_check
      _
    $region55: #{tpu_custom_call.1} parent=1 // pred_check_branch
      %975 = sbr.rel (0) target = $region57
    $region56: #{tpu_custom_call.1} parent=1 // pred_region
      %s977 = ssub.s32 128, 128
      %978 = vsyncadd [#allocation13], %s977
      %s980 = sshll.u32 [#allocation12], 4
      %s981 = int_to_ptr.vmem [resolvable:$true] %s980
      %983 = dma.vmem_to_hbm [thread:$0]  %s981, 128, %s8, [#allocation13]
    $region57: #{tpu_custom_call.1} parent=1 // pred_fallthru
      _
    // Predicated region
    $region58: #{tpu_custom_call.1} parent=1 // pred_check
      _
    $region59: #{tpu_custom_call.1} parent=1 // pred_check_branch
      %985 = sbr.rel (0) target = $region61
    $region60: #{tpu_custom_call.1} parent=1 // pred_region
      %986 = dma.done [#allocation4], 1024
    $region61: #{tpu_custom_call.1} parent=1 // pred_fallthru
      _
    // Predicated region
    $region62: #{tpu_custom_call.1} parent=1 // pred_check
      _
    $region63: #{tpu_custom_call.1} parent=1 // pred_check_branch
      %988 = sbr.rel (0) target = $region65
    $region64: #{tpu_custom_call.1} parent=1 // pred_region
      %989 = dma.done [#allocation13], 128
    $region65: #{tpu_custom_call.1} parent=1 // pred_fallthru
      _
    %990 = vsyncpa [#allocation3], 1
    %991 = vsyncpa [#allocation6], 1
    %992 = vsyncpa [#allocation9], 1
    %993 = vsyncpa [#allocation4], 1
    %994 = vsyncpa [#allocation13], 1

</llo_original>
